<compile_context>
chip_gen: v6e
topology: v6e:2x2x1
jax: 0.10.0
libtpu: 0.0.40
codegen_flags: <defaults>
</compile_context>

<pallas_src>
import functools

import jax
import jax.numpy as jnp
from jax import lax
from jax.experimental import pallas as pl
from jax.experimental.pallas import tpu as pltpu

_MB = 1024 * 1024


# ------------------------------ small helpers ------------------------------ #
def _pad_to(n, m):
    return (n + m - 1) // m * m


def _tile_bytes(shape, itemsize):
    """VMEM bytes of one buffer holding `shape`, including (8,128) tiling pad."""
    if len(shape) == 1:
        return _pad_to(shape[0], 128) * 8 * itemsize
    lead = 1
    for d in shape[:-2]:
        lead *= int(d)
    return lead * _pad_to(int(shape[-2]), 8) * _pad_to(int(shape[-1]), 128) * itemsize


def _const_spec(shape, use_buffered):
    """BlockSpec for an operand whose block never changes across the grid."""
    index_map = lambda b, s, _n=len(shape): (0,) * _n
    if use_buffered:
        try:
            return pl.BlockSpec(shape, index_map, pipeline_mode=pl.Buffered(1))
        except Exception:  # older API without pipeline_mode / Buffered
            pass
    return pl.BlockSpec(shape, index_map)


def _plan_tiling(H2, W2, K1, c1, c2, E, out_itemsize, row_target=896):
    """Pick the strip height h2 (a divisor of H2) and a VMEM budget.

    Targets ~512-1024 output rows per grid step (roofline plateau), prefers
    >=2 strips so both v7x TensorCores get work, and keeps the estimated
    double-buffered footprint + 8 MiB margin under a generation-aware cap.
    """
    try:
        phys = pltpu.get_tpu_info().vmem_capacity_bytes
    except Exception:
        phys = 64 * _MB
    cap = 48 * _MB if phys <= 64 * _MB else 100 * _MB

    weight_bytes = (_tile_bytes((K1, 2 * c1), 2) + _tile_bytes((1, 2 * c1), 4)
                    + 2 * _tile_bytes((3, 2 * c1, c2), 2) + _tile_bytes((1, c2), 4)
                    + _tile_bytes((c2, E), 2) + _tile_bytes((1, E), 4))

    def footprint(d):
        m2 = d * W2
        stream = 2 * (_tile_bytes((m2, K1), 2)
                      + _tile_bytes(((d + 1) * W2, K1), 2)
                      + _tile_bytes((m2, E), out_itemsize))
        scratch = _tile_bytes((m2, c2), 4)
        temps = (3 * _tile_bytes((m2, 2 * c1), 4) + 4 * _tile_bytes((m2, c2), 4)
                 + 2 * _tile_bytes((m2, E), 4))
        return stream + 2 * weight_bytes + scratch + 2 * temps

    margin = 8 * _MB
    divs = [d for d in range(1, H2 + 1) if H2 % d == 0]
    cands = [d for d in divs if (d * W2) % 8 == 0 or d == H2]
    multi = [d for d in cands if H2 // d >= 2]
    if multi:
        cands = multi

    chosen = None
    for d in sorted([d for d in cands if d * W2 <= row_target], reverse=True):
        if footprint(d) + margin <= cap:
            chosen = d
            break
    if chosen is None:
        for d in sorted(cands):
            if footprint(d) + margin <= cap:
                chosen = d
                break
    if chosen is None:
        chosen = min(cands)
    limit = int(min(cap, max(32 * _MB, footprint(chosen) + margin)))
    return chosen, H2 // chosen, limit


# ------------------------------ Pallas kernel ------------------------------ #
def _fused_stem_kernel(ce_ref, co_ref, w1_ref, t1_ref, w2p_ref, w2s_ref,
                       t2_ref, w3_ref, b3_ref, o_ref, acc_ref, *, w2_cols):
    """Fused conv1+BN+ReLU -> conv2+BN+ReLU -> conv3(1x1)+bias for one strip."""
    W2 = w2_cols
    m2 = ce_ref.shape[0]                      # output rows of this strip
    s = pl.program_id(1)

    def stage1(patches):                      # (m, 2*9*Cin) bf16 -> (m, 2*c1) bf16
        z = jnp.dot(patches, w1_ref[...], preferred_element_type=jnp.float32)
        return jnp.maximum(z + t1_ref[...], 0.0).astype(jnp.bfloat16)

    # Stage-1 activations for the three conv-2 row taps (ky = 0, 1, 2).
    g_top = stage1(co_ref[:m2, :])            # odd rows  2*(s*h2+t)-1
    g_mid = stage1(ce_ref[...])               # even rows 2*(s*h2+t)
    g_bot = stage1(co_ref[W2:, :])            # odd rows  2*(s*h2+t)+1

    # conv-2 top padding: the stage-1 row "-1" (strip 0 only) must be exact 0.
    ridx = lax.broadcasted_iota(jnp.int32, g_top.shape, 0)
    g_top = jnp.where(jnp.logical_or(ridx >= W2, s > 0),
                      g_top, 0).astype(jnp.bfloat16)

    # Stage 2: column taps kx=1,2 hit the same output column ("aligned"),
    # kx=0 comes from the previous column pair ("shifted", paired weight has
    # zeros for the even half so no lane slicing is needed).
    aligned = jnp.dot(g_top, w2p_ref[0], preferred_element_type=jnp.float32)
    aligned = aligned + jnp.dot(g_mid, w2p_ref[1], preferred_element_type=jnp.float32)
    aligned = aligned + jnp.dot(g_bot, w2p_ref[2], preferred_element_type=jnp.float32)
    shifted = jnp.dot(g_top, w2s_ref[0], preferred_element_type=jnp.float32)
    shifted = shifted + jnp.dot(g_mid, w2s_ref[1], preferred_element_type=jnp.float32)
    shifted = shifted + jnp.dot(g_bot, w2s_ref[2], preferred_element_type=jnp.float32)

    # The last column pair of each spatial row has no right neighbour.
    cidx = lax.broadcasted_iota(jnp.int32, shifted.shape, 0)
    shifted = jnp.where((cidx + 1) % W2 != 0, shifted, 0.0)

    acc_ref[...] = aligned
    if m2 > 1:
        acc_ref[1:, :] = acc_ref[1:, :] + shifted[:m2 - 1, :]

    # BN shift + ReLU, then the fused 1x1 projection (conv3) with bias.
    act = jnp.maximum(acc_ref[...] + t2_ref[...], 0.0).astype(jnp.bfloat16)
    y = jnp.dot(act, w3_ref[...], preferred_element_type=jnp.float32) + b3_ref[...]
    o_ref[...] = y.astype(o_ref.dtype)


# ------------------------------- JAX glue ---------------------------------- #
def _im2col_3x3_s2_p1(x_nhwc):
    """3x3 / stride 2 / pad 1 patches -> (B, H/2, W/2, 9*C), tap-major layout."""
    B, H, W, C = x_nhwc.shape
    Ho, Wo = H // 2, W // 2
    xp = jnp.pad(x_nhwc, ((0, 0), (1, 1), (1, 1), (0, 0)))
    taps = []
    for ky in range(3):
        for kx in range(3):
            taps.append(lax.slice(
                xp, (0, ky, kx, 0),
                (B, ky + 2 * Ho - 1, kx + 2 * Wo - 1, C), (1, 2, 2, 1)))
    return jnp.concatenate(taps, axis=-1)


def init_conv_stem_params(key, embed_dim=32, in_chans=3):
    assert embed_dim % 8 == 0
    c1, c2 = embed_dim // 8, embed_dim // 4
    ks = jax.random.split(key, 12)
    p = {}
    # HWIO conv weights (PyTorch OIHW transposed to (kH, kW, I, O))
    p["w1"] = 0.1 * jax.random.normal(ks[0], (3, 3, in_chans, c1), jnp.float32)
    p["w2"] = 0.1 * jax.random.normal(ks[1], (3, 3, c1, c2), jnp.float32)
    p["w3"] = 0.1 * jax.random.normal(ks[2], (1, 1, c2, embed_dim), jnp.float32)
    p["b3"] = 0.01 * jax.random.normal(ks[3], (embed_dim,), jnp.float32)
    # BatchNorm2d (inference mode: running stats + affine)
    for i, c, o in ((1, c1, 4), (2, c2, 8)):
        p[f"bn{i}_gamma"] = 1.0 + 0.05 * jax.random.normal(ks[o + 0], (c,), jnp.float32)
        p[f"bn{i}_beta"] = 0.05 * jax.random.normal(ks[o + 1], (c,), jnp.float32)
        p[f"bn{i}_mean"] = 0.1 * jax.random.normal(ks[o + 2], (c,), jnp.float32)
        p[f"bn{i}_var"] = 0.5 + jnp.abs(jax.random.normal(ks[o + 3], (c,), jnp.float32))
    return p


def _bn_fold(params, i, eps=1e-5):
    g, b = params[f"bn{i}_gamma"], params[f"bn{i}_beta"]
    m, v = params[f"bn{i}_mean"], params[f"bn{i}_var"]
    scale = g / jnp.sqrt(v + eps)
    return scale, b - m * scale


def conv_stem_forward(params, x_nchw, embed_dim, out_dtype=jnp.float32,
                      row_target=896, use_buffered_aux=True):
    """Pallas-backed ConvStem forward: (B, 3, H, W) -> (B, H/4*W/4, embed_dim)."""
    B, Cin, H, W = x_nchw.shape
    assert H % 4 == 0 and W % 4 == 0, "H and W must be multiples of 4"
    assert embed_dim % 8 == 0
    c1, c2 = embed_dim // 8, embed_dim // 4
    H1, W2, H2 = H // 2, W // 4, H // 4
    K = 9 * Cin
    K1 = 2 * K                                    # column-pair contraction dim
    cdt = jnp.bfloat16

    # --- fold BN into the convs; build pair-layout weights (tiny, one-off) ---
    s1, t1 = _bn_fold(params, 1)
    s2, t2 = _bn_fold(params, 2)
    w1f = (params["w1"] * s1).reshape(K, c1)
    w1bd = jnp.zeros((K1, 2 * c1), jnp.float32)
    w1bd = w1bd.at[:K, :c1].set(w1f).at[K:, c1:].set(w1f)     # block-diagonal
    t1p = jnp.concatenate([t1, t1])[None, :]
    w2f = params["w2"] * s2                                   # (3, 3, c1, c2)
    w2p = jnp.stack([jnp.concatenate([w2f[ky, 1], w2f[ky, 2]], axis=0)
                     for ky in range(3)])                     # (3, 2*c1, c2)
    w2s = jnp.stack([jnp.concatenate(
        [jnp.zeros((c1, c2), jnp.float32), w2f[ky, 0]], axis=0)
        for ky in range(3)])                                  # (3, 2*c1, c2)
    w3 = params["w3"].reshape(c2, embed_dim)
    b3 = params["b3"][None, :]

    # --- pick strip height / grid and a footprint-derived VMEM budget ---
    h2, n_s, vmem_limit = _plan_tiling(
        H2, W2, K1, c1, c2, embed_dim, jnp.dtype(out_dtype).itemsize, row_target)
    m2 = h2 * W2

    # --- stage-1 im2col + strip-major / row-parity relayout (tiny tensors) ---
    x = jnp.transpose(x_nchw, (0, 2, 3, 1)).astype(cdt)       # NCHW -> NHWC bf16
    cols = _im2col_3x3_s2_p1(x)                               # (B, H1, W1, 9C)
    cols = cols.reshape(B, H1, W2, K1)                        # fold column parity
    ce = cols[:, 0::2].reshape(B, n_s, m2, K1)                # even stage-1 rows
    po = jnp.concatenate(                                     # odd rows + zero row "-1"
        [jnp.zeros((B, 1, W2, K1), cdt), cols[:, 1::2]], axis=1)
    co = jnp.stack([po[:, i * h2:i * h2 + h2 + 1].reshape(B, (h2 + 1) * W2, K1)
                    for i in range(n_s)], axis=1)             # halo row duplicated

    aux = (w1bd.astype(cdt), t1p.astype(jnp.float32),
           w2p.astype(cdt), w2s.astype(cdt), t2[None, :].astype(jnp.float32),
           w3.astype(cdt), b3.astype(jnp.float32))

    in_specs = [
        pl.BlockSpec((None, None, m2, K1), lambda b, s: (b, s, 0, 0)),
        pl.BlockSpec((None, None, (h2 + 1) * W2, K1), lambda b, s: (b, s, 0, 0)),
    ] + [_const_spec(a.shape, use_buffered_aux) for a in aux]

    out = pl.pallas_call(
        functools.partial(_fused_stem_kernel, w2_cols=W2),
        out_shape=jax.ShapeDtypeStruct((B, H2 * W2, embed_dim), out_dtype),
        grid=(B, n_s),
        in_specs=in_specs,
        out_specs=pl.BlockSpec((None, m2, embed_dim), lambda b, s: (b, s, 0)),
        scratch_shapes=[pltpu.VMEM((m2, c2), jnp.float32)],
        compiler_params=pltpu.CompilerParams(
            dimension_semantics=("parallel", "parallel"),
            vmem_limit_bytes=vmem_limit),
    )(ce, co, *aux)
    # flatten(2).transpose(1, 2) equivalent; norm = Identity (norm_layer=None)
    return out


# ---------------------------- references (checks) --------------------------- #
def reference_forward_f32(params, x_nchw, embed_dim):
    """Full-f32 reference (PyTorch semantics)."""
    x = jnp.transpose(x_nchw, (0, 2, 3, 1)).astype(jnp.float32)
    eps = 1e-5

    def conv(x, w, stride, pad):
        return lax.conv_general_dilated(
            x, w, (stride, stride), [(pad, pad), (pad, pad)],
            dimension_numbers=("NHWC", "HWIO", "NHWC"),
            precision=lax.Precision.HIGHEST)

    def bn_relu(x, i):
        g, b = params[f"bn{i}_gamma"], params[f"bn{i}_beta"]
        m, v = params[f"bn{i}_mean"], params[f"bn{i}_var"]
        return jnp.maximum((x - m) / jnp.sqrt(v + eps) * g + b, 0.0)

    y = bn_relu(conv(x, params["w1"], 2, 1), 1)
    y = bn_relu(conv(y, params["w2"], 2, 1), 2)
    y = conv(y, params["w3"], 1, 0) + params["b3"]
    B, Ho, Wo, E = y.shape
    return y.reshape(B, Ho * Wo, E)


def reference_forward_matched(params, x_nchw, embed_dim):
    """Reference with the kernel's numeric policy: folded-BN bf16 weights,
    bf16 activations, f32 accumulation."""
    x = jnp.transpose(x_nchw, (0, 2, 3, 1)).astype(jnp.bfloat16)

    def conv(x, w, stride, pad):
        return lax.conv_general_dilated(
            x, w.astype(jnp.bfloat16), (stride, stride), [(pad, pad), (pad, pad)],
            dimension_numbers=("NHWC", "HWIO", "NHWC"),
            preferred_element_type=jnp.float32)

    s1, t1 = _bn_fold(params, 1)
    s2, t2 = _bn_fold(params, 2)
    y = jnp.maximum(conv(x, params["w1"] * s1, 2, 1) + t1, 0.0).astype(jnp.bfloat16)
    y = jnp.maximum(conv(y, params["w2"] * s2, 2, 1) + t2, 0.0).astype(jnp.bfloat16)
    y = conv(y, params["w3"], 1, 0) + params["b3"]
    B, Ho, Wo, E = y.shape
    return y.reshape(B, Ho * Wo, E)


# ---------------------------------- main ----------------------------------- #
if __name__ == "__main__":
    key = jax.random.PRNGKey(0)
    kp, kx = jax.random.split(key)

    embed_dim = 32                      # embed_dim % 8 == 0
    B, C, H, W = 2, 3, 16, 16           # small img_size; patch_size fixed at 4
    params = init_conv_stem_params(kp, embed_dim=embed_dim, in_chans=C)
    x = jax.random.normal(kx, (B, C, H, W), jnp.float32)

    fwd = functools.partial(conv_stem_forward, embed_dim=embed_dim)
    try:
        compiled = jax.jit(fwd).lower(params, x).compile()
        out = jax.block_until_ready(compiled(params, x))
    except Exception:
        # graceful fallback: drop the single-buffered constant-operand specs
        fwd_nb = functools.partial(conv_stem_forward, embed_dim=embed_dim,
                                   use_buffered_aux=False)
        out = jax.block_until_ready(jax.jit(fwd_nb)(params, x))

    ref_m = reference_forward_matched(params, x, embed_dim)
    ref_f = reference_forward_f32(params, x, embed_dim)

    assert out.shape == (B, (H // 4) * (W // 4), embed_dim), out.shape
    err_m = float(jnp.max(jnp.abs(out - ref_m)))
    err_f = float(jnp.max(jnp.abs(out - ref_f)))
    # Same bf16/f32-accumulation policy -> tight; f32 reference -> bounds bf16 error.
    assert jnp.allclose(out, ref_m, rtol=1e-2, atol=1e-2), f"matched max_err={err_m}"
    assert jnp.allclose(out, ref_f, rtol=4e-2, atol=4e-2), f"f32 max_err={err_f}"

    print("KERNEL_OK")
</pallas_src>

<mosaic_0001>
module attributes {stable_mosaic.version = 11 : i64} {
  func.func @_fused_stem_kernel(%arg0: i32, %arg1: i32, %arg2: memref<1x1x8x54xbf16, #tpu.memory_space<vmem>>, %arg3: memref<1x1x12x54xbf16, #tpu.memory_space<vmem>>, %arg4: memref<54x8xbf16, #tpu.memory_space<vmem>>, %arg5: memref<1x8xf32, #tpu.memory_space<vmem>>, %arg6: memref<3x8x8xbf16, #tpu.memory_space<vmem>>, %arg7: memref<3x8x8xbf16, #tpu.memory_space<vmem>>, %arg8: memref<1x8xf32, #tpu.memory_space<vmem>>, %arg9: memref<8x32xbf16, #tpu.memory_space<vmem>>, %arg10: memref<1x32xf32, #tpu.memory_space<vmem>>, %arg11: memref<1x8x32xf32, #tpu.memory_space<vmem>>, %arg12: memref<8x8xf32, #tpu.memory_space<vmem>>) attributes {dimension_semantics = [#tpu.dimension_semantics<parallel>, #tpu.dimension_semantics<parallel>], iteration_bounds = array<i64: 2, 2>, scalar_prefetch = 0 : i64, scratch_operands = 1 : i64, tpu.core_type = #tpu.core_type<tc>, window_params = [{transform_indices = @transform_0, window_bounds = array<i64: 1, 1, 8, 54>}, {transform_indices = @transform_1, window_bounds = array<i64: 1, 1, 12, 54>}, {pipeline_mode = #tpu.pipeline_mode<synchronous>, transform_indices = @transform_2, window_bounds = array<i64: 54, 8>}, {pipeline_mode = #tpu.pipeline_mode<synchronous>, transform_indices = @transform_3, window_bounds = array<i64: 1, 8>}, {pipeline_mode = #tpu.pipeline_mode<synchronous>, transform_indices = @transform_4, window_bounds = array<i64: 3, 8, 8>}, {pipeline_mode = #tpu.pipeline_mode<synchronous>, transform_indices = @transform_5, window_bounds = array<i64: 3, 8, 8>}, {pipeline_mode = #tpu.pipeline_mode<synchronous>, transform_indices = @transform_6, window_bounds = array<i64: 1, 8>}, {pipeline_mode = #tpu.pipeline_mode<synchronous>, transform_indices = @transform_7, window_bounds = array<i64: 8, 32>}, {pipeline_mode = #tpu.pipeline_mode<synchronous>, transform_indices = @transform_8, window_bounds = array<i64: 1, 32>}, {transform_indices = @transform_9, window_bounds = array<i64: 1, 8, 32>}]} {
    %c0 = arith.constant 0 : index
    %c0_0 = arith.constant 0 : index
    %c0_1 = arith.constant 0 : index
    %c0_2 = arith.constant 0 : index
    %0 = vector.load %arg3[%c0, %c0_0, %c0_1, %c0_2] : memref<1x1x12x54xbf16, #tpu.memory_space<vmem>>, vector<1x1x8x54xbf16>
    %1 = vector.shape_cast %0 : vector<1x1x8x54xbf16> to vector<8x54xbf16>
    %c0_3 = arith.constant 0 : index
    %c0_4 = arith.constant 0 : index
    %2 = vector.load %arg4[%c0_3, %c0_4] : memref<54x8xbf16, #tpu.memory_space<vmem>>, vector<54x8xbf16>
    %cst = arith.constant dense<0.000000e+00> : vector<8x8xf32>
    %3 = tpu.matmul %1, %2, %cst {dimension_numbers = #tpu.dot_dimension_numbers<[1], [0], [0], [1], [0, 0, 1, 1], [], []>} : vector<8x54xbf16>, vector<54x8xbf16>, vector<8x8xf32> -> vector<8x8xf32>
    %c0_5 = arith.constant 0 : index
    %c0_6 = arith.constant 0 : index
    %4 = vector.load %arg5[%c0_5, %c0_6] : memref<1x8xf32, #tpu.memory_space<vmem>>, vector<1x8xf32>
    %5 = vector.broadcast %4 : vector<1x8xf32> to vector<8x8xf32>
    %6 = arith.addf %3, %5 : vector<8x8xf32>
    %cst_7 = arith.constant 0.000000e+00 : f32
    %7 = vector.broadcast %cst_7 : f32 to vector<8x8xf32>
    %8 = arith.maximumf %6, %7 : vector<8x8xf32>
    %9 = arith.truncf %8 : vector<8x8xf32> to vector<8x8xbf16>
    %c0_8 = arith.constant 0 : index
    %c0_9 = arith.constant 0 : index
    %c0_10 = arith.constant 0 : index
    %c0_11 = arith.constant 0 : index
    %10 = vector.load %arg2[%c0_8, %c0_9, %c0_10, %c0_11] : memref<1x1x8x54xbf16, #tpu.memory_space<vmem>>, vector<1x1x8x54xbf16>
    %11 = vector.shape_cast %10 : vector<1x1x8x54xbf16> to vector<8x54xbf16>
    %c0_12 = arith.constant 0 : index
    %c0_13 = arith.constant 0 : index
    %12 = vector.load %arg4[%c0_12, %c0_13] : memref<54x8xbf16, #tpu.memory_space<vmem>>, vector<54x8xbf16>
    %cst_14 = arith.constant dense<0.000000e+00> : vector<8x8xf32>
    %13 = tpu.matmul %11, %12, %cst_14 {dimension_numbers = #tpu.dot_dimension_numbers<[1], [0], [0], [1], [0, 0, 1, 1], [], []>} : vector<8x54xbf16>, vector<54x8xbf16>, vector<8x8xf32> -> vector<8x8xf32>
    %c0_15 = arith.constant 0 : index
    %c0_16 = arith.constant 0 : index
    %14 = vector.load %arg5[%c0_15, %c0_16] : memref<1x8xf32, #tpu.memory_space<vmem>>, vector<1x8xf32>
    %15 = vector.broadcast %14 : vector<1x8xf32> to vector<8x8xf32>
    %16 = arith.addf %13, %15 : vector<8x8xf32>
    %cst_17 = arith.constant 0.000000e+00 : f32
    %17 = vector.broadcast %cst_17 : f32 to vector<8x8xf32>
    %18 = arith.maximumf %16, %17 : vector<8x8xf32>
    %19 = arith.truncf %18 : vector<8x8xf32> to vector<8x8xbf16>
    %c0_18 = arith.constant 0 : index
    %c0_19 = arith.constant 0 : index
    %c4 = arith.constant 4 : index
    %c0_20 = arith.constant 0 : index
    %20 = vector.load %arg3[%c0_18, %c0_19, %c4, %c0_20] : memref<1x1x12x54xbf16, #tpu.memory_space<vmem>>, vector<1x1x8x54xbf16>
    %21 = vector.shape_cast %20 : vector<1x1x8x54xbf16> to vector<8x54xbf16>
    %c0_21 = arith.constant 0 : index
    %c0_22 = arith.constant 0 : index
    %22 = vector.load %arg4[%c0_21, %c0_22] : memref<54x8xbf16, #tpu.memory_space<vmem>>, vector<54x8xbf16>
    %cst_23 = arith.constant dense<0.000000e+00> : vector<8x8xf32>
    %23 = tpu.matmul %21, %22, %cst_23 {dimension_numbers = #tpu.dot_dimension_numbers<[1], [0], [0], [1], [0, 0, 1, 1], [], []>} : vector<8x54xbf16>, vector<54x8xbf16>, vector<8x8xf32> -> vector<8x8xf32>
    %c0_24 = arith.constant 0 : index
    %c0_25 = arith.constant 0 : index
    %24 = vector.load %arg5[%c0_24, %c0_25] : memref<1x8xf32, #tpu.memory_space<vmem>>, vector<1x8xf32>
    %25 = vector.broadcast %24 : vector<1x8xf32> to vector<8x8xf32>
    %26 = arith.addf %23, %25 : vector<8x8xf32>
    %cst_26 = arith.constant 0.000000e+00 : f32
    %27 = vector.broadcast %cst_26 : f32 to vector<8x8xf32>
    %28 = arith.maximumf %26, %27 : vector<8x8xf32>
    %29 = arith.truncf %28 : vector<8x8xf32> to vector<8x8xbf16>
    %30 = tpu.iota {dimensions = array<i32: 0>} : vector<8x8xi32>
    %c4_i32 = arith.constant 4 : i32
    %31 = vector.broadcast %c4_i32 : i32 to vector<8x8xi32>
    %32 = arith.cmpi sge, %30, %31 : vector<8x8xi32>
    %c0_i32 = arith.constant 0 : i32
    %33 = arith.cmpi sgt, %arg1, %c0_i32 : i32
    %34 = vector.broadcast %33 : i1 to vector<8x8xi1>
    %35 = arith.ori %32, %34 : vector<8x8xi1>
    %c0_i32_27 = arith.constant 0 : i32
    %36 = arith.sitofp %c0_i32_27 : i32 to bf16
    %37 = vector.broadcast %36 : bf16 to vector<8x8xbf16>
    %38 = arith.select %35, %9, %37 : vector<8x8xi1>, vector<8x8xbf16>
    %c0_28 = arith.constant 0 : index
    %c0_29 = arith.constant 0 : index
    %c0_30 = arith.constant 0 : index
    %39 = vector.load %arg6[%c0_28, %c0_29, %c0_30] : memref<3x8x8xbf16, #tpu.memory_space<vmem>>, vector<1x8x8xbf16>
    %40 = vector.shape_cast %39 : vector<1x8x8xbf16> to vector<8x8xbf16>
    %cst_31 = arith.constant dense<0.000000e+00> : vector<8x8xf32>
    %41 = tpu.matmul %38, %40, %cst_31 {dimension_numbers = #tpu.dot_dimension_numbers<[1], [0], [0], [1], [0, 0, 1, 1], [], []>} : vector<8x8xbf16>, vector<8x8xbf16>, vector<8x8xf32> -> vector<8x8xf32>
    %c1 = arith.constant 1 : index
    %c0_32 = arith.constant 0 : index
    %c0_33 = arith.constant 0 : index
    %42 = vector.load %arg6[%c1, %c0_32, %c0_33] : memref<3x8x8xbf16, #tpu.memory_space<vmem>>, vector<1x8x8xbf16>
    %43 = vector.shape_cast %42 : vector<1x8x8xbf16> to vector<8x8xbf16>
    %cst_34 = arith.constant dense<0.000000e+00> : vector<8x8xf32>
    %44 = tpu.matmul %19, %43, %cst_34 {dimension_numbers = #tpu.dot_dimension_numbers<[1], [0], [0], [1], [0, 0, 1, 1], [], []>} : vector<8x8xbf16>, vector<8x8xbf16>, vector<8x8xf32> -> vector<8x8xf32>
    %45 = arith.addf %41, %44 : vector<8x8xf32>
    %c2 = arith.constant 2 : index
    %c0_35 = arith.constant 0 : index
    %c0_36 = arith.constant 0 : index
    %46 = vector.load %arg6[%c2, %c0_35, %c0_36] : memref<3x8x8xbf16, #tpu.memory_space<vmem>>, vector<1x8x8xbf16>
    %47 = vector.shape_cast %46 : vector<1x8x8xbf16> to vector<8x8xbf16>
    %cst_37 = arith.constant dense<0.000000e+00> : vector<8x8xf32>
    %48 = tpu.matmul %29, %47, %cst_37 {dimension_numbers = #tpu.dot_dimension_numbers<[1], [0], [0], [1], [0, 0, 1, 1], [], []>} : vector<8x8xbf16>, vector<8x8xbf16>, vector<8x8xf32> -> vector<8x8xf32>
    %49 = arith.addf %45, %48 : vector<8x8xf32>
    %c0_38 = arith.constant 0 : index
    %c0_39 = arith.constant 0 : index
    %c0_40 = arith.constant 0 : index
    %50 = vector.load %arg7[%c0_38, %c0_39, %c0_40] : memref<3x8x8xbf16, #tpu.memory_space<vmem>>, vector<1x8x8xbf16>
    %51 = vector.shape_cast %50 : vector<1x8x8xbf16> to vector<8x8xbf16>
    %cst_41 = arith.constant dense<0.000000e+00> : vector<8x8xf32>
    %52 = tpu.matmul %38, %51, %cst_41 {dimension_numbers = #tpu.dot_dimension_numbers<[1], [0], [0], [1], [0, 0, 1, 1], [], []>} : vector<8x8xbf16>, vector<8x8xbf16>, vector<8x8xf32> -> vector<8x8xf32>
    %c1_42 = arith.constant 1 : index
    %c0_43 = arith.constant 0 : index
    %c0_44 = arith.constant 0 : index
    %53 = vector.load %arg7[%c1_42, %c0_43, %c0_44] : memref<3x8x8xbf16, #tpu.memory_space<vmem>>, vector<1x8x8xbf16>
    %54 = vector.shape_cast %53 : vector<1x8x8xbf16> to vector<8x8xbf16>
    %cst_45 = arith.constant dense<0.000000e+00> : vector<8x8xf32>
    %55 = tpu.matmul %19, %54, %cst_45 {dimension_numbers = #tpu.dot_dimension_numbers<[1], [0], [0], [1], [0, 0, 1, 1], [], []>} : vector<8x8xbf16>, vector<8x8xbf16>, vector<8x8xf32> -> vector<8x8xf32>
    %56 = arith.addf %52, %55 : vector<8x8xf32>
    %c2_46 = arith.constant 2 : index
    %c0_47 = arith.constant 0 : index
    %c0_48 = arith.constant 0 : index
    %57 = vector.load %arg7[%c2_46, %c0_47, %c0_48] : memref<3x8x8xbf16, #tpu.memory_space<vmem>>, vector<1x8x8xbf16>
    %58 = vector.shape_cast %57 : vector<1x8x8xbf16> to vector<8x8xbf16>
    %cst_49 = arith.constant dense<0.000000e+00> : vector<8x8xf32>
    %59 = tpu.matmul %29, %58, %cst_49 {dimension_numbers = #tpu.dot_dimension_numbers<[1], [0], [0], [1], [0, 0, 1, 1], [], []>} : vector<8x8xbf16>, vector<8x8xbf16>, vector<8x8xf32> -> vector<8x8xf32>
    %60 = arith.addf %56, %59 : vector<8x8xf32>
    %61 = tpu.iota {dimensions = array<i32: 0>} : vector<8x8xi32>
    %c1_i32 = arith.constant 1 : i32
    %62 = vector.broadcast %c1_i32 : i32 to vector<8x8xi32>
    %63 = arith.addi %61, %62 : vector<8x8xi32>
    %c4_i32_50 = arith.constant 4 : i32
    %c0_i32_51 = arith.constant 0 : i32
    %64 = arith.cmpi eq, %c4_i32_50, %c0_i32_51 : i32
    %c1_i32_52 = arith.constant 1 : i32
    %65 = arith.select %64, %c1_i32_52, %c4_i32_50 : i32
    %66 = vector.broadcast %65 : i32 to vector<8x8xi32>
    %67 = arith.remsi %63, %66 : vector<8x8xi32>
    %c0_i32_53 = arith.constant 0 : i32
    %68 = vector.broadcast %c0_i32_53 : i32 to vector<8x8xi32>
    %69 = arith.cmpi ne, %67, %68 : vector<8x8xi32>
    %c0_i32_54 = arith.constant 0 : i32
    %70 = vector.broadcast %c0_i32_54 : i32 to vector<8x8xi32>
    %71 = arith.cmpi slt, %67, %70 : vector<8x8xi32>
    %c0_i32_55 = arith.constant 0 : i32
    %72 = arith.cmpi slt, %65, %c0_i32_55 : i32
    %73 = vector.broadcast %72 : i1 to vector<8x8xi1>
    %74 = vector.broadcast %73 : vector<8x8xi1> to vector<8x8xi1>
    %75 = arith.xori %71, %74 : vector<8x8xi1>
    %76 = arith.andi %75, %69 : vector<8x8xi1>
    %77 = vector.broadcast %65 : i32 to vector<8x8xi32>
    %78 = arith.addi %67, %77 : vector<8x8xi32>
    %79 = arith.select %76, %78, %67 : vector<8x8xi1>, vector<8x8xi32>
    %c0_i32_56 = arith.constant 0 : i32
    %80 = vector.broadcast %c0_i32_56 : i32 to vector<8x8xi32>
    %81 = arith.cmpi ne, %79, %80 : vector<8x8xi32>
    %cst_57 = arith.constant 0.000000e+00 : f32
    %82 = vector.broadcast %cst_57 : f32 to vector<8x8xf32>
    %83 = arith.select %81, %60, %82 : vector<8x8xi1>, vector<8x8xf32>
    %c0_58 = arith.constant 0 : index
    %c0_59 = arith.constant 0 : index
    %84 = vector.load %arg12[%c0_58, %c0_59] : memref<8x8xf32, #tpu.memory_space<vmem>>, vector<8x8xf32>
    tpu.vector_store %arg12[%c0_58, %c0_59], %49 {strides = array<i32>} : memref<8x8xf32, #tpu.memory_space<vmem>>, vector<8x8xf32>,
    %c1_60 = arith.constant 1 : index
    %c0_61 = arith.constant 0 : index
    %85 = vector.load %arg12[%c1_60, %c0_61] : memref<8x8xf32, #tpu.memory_space<vmem>>, vector<7x8xf32>
    %86 = vector.extract_strided_slice %83 {offsets = [0, 0], sizes = [7, 8], strides = [1, 1]} : vector<8x8xf32> to vector<7x8xf32>
    %87 = arith.addf %85, %86 : vector<7x8xf32>
    %c1_62 = arith.constant 1 : index
    %c0_63 = arith.constant 0 : index
    %88 = vector.load %arg12[%c1_62, %c0_63] : memref<8x8xf32, #tpu.memory_space<vmem>>, vector<7x8xf32>
    tpu.vector_store %arg12[%c1_62, %c0_63], %87 {strides = array<i32>} : memref<8x8xf32, #tpu.memory_space<vmem>>, vector<7x8xf32>,
    %c0_64 = arith.constant 0 : index
    %c0_65 = arith.constant 0 : index
    %89 = vector.load %arg12[%c0_64, %c0_65] : memref<8x8xf32, #tpu.memory_space<vmem>>, vector<8x8xf32>
    %c0_66 = arith.constant 0 : index
    %c0_67 = arith.constant 0 : index
    %90 = vector.load %arg8[%c0_66, %c0_67] : memref<1x8xf32, #tpu.memory_space<vmem>>, vector<1x8xf32>
    %91 = vector.broadcast %90 : vector<1x8xf32> to vector<8x8xf32>
    %92 = arith.addf %89, %91 : vector<8x8xf32>
    %cst_68 = arith.constant 0.000000e+00 : f32
    %93 = vector.broadcast %cst_68 : f32 to vector<8x8xf32>
    %94 = arith.maximumf %92, %93 : vector<8x8xf32>
    %95 = arith.truncf %94 : vector<8x8xf32> to vector<8x8xbf16>
    %c0_69 = arith.constant 0 : index
    %c0_70 = arith.constant 0 : index
    %96 = vector.load %arg9[%c0_69, %c0_70] : memref<8x32xbf16, #tpu.memory_space<vmem>>, vector<8x32xbf16>
    %cst_71 = arith.constant dense<0.000000e+00> : vector<8x32xf32>
    %97 = tpu.matmul %95, %96, %cst_71 {dimension_numbers = #tpu.dot_dimension_numbers<[1], [0], [0], [1], [0, 0, 1, 1], [], []>} : vector<8x8xbf16>, vector<8x32xbf16>, vector<8x32xf32> -> vector<8x32xf32>
    %c0_72 = arith.constant 0 : index
    %c0_73 = arith.constant 0 : index
    %98 = vector.load %arg10[%c0_72, %c0_73] : memref<1x32xf32, #tpu.memory_space<vmem>>, vector<1x32xf32>
    %99 = vector.broadcast %98 : vector<1x32xf32> to vector<8x32xf32>
    %100 = arith.addf %97, %99 : vector<8x32xf32>
    %c0_74 = arith.constant 0 : index
    %c0_75 = arith.constant 0 : index
    %c0_76 = arith.constant 0 : index
    %101 = vector.load %arg11[%c0_74, %c0_75, %c0_76] : memref<1x8x32xf32, #tpu.memory_space<vmem>>, vector<1x8x32xf32>
    %102 = vector.shape_cast %101 : vector<1x8x32xf32> to vector<8x32xf32>
    %103 = vector.shape_cast %100 : vector<8x32xf32> to vector<1x8x32xf32>
    tpu.vector_store %arg11[%c0_74, %c0_75, %c0_76], %103 {strides = array<i32>} : memref<1x8x32xf32, #tpu.memory_space<vmem>>, vector<1x8x32xf32>,
    return
  }
  func.func @transform_0(%arg0: i32, %arg1: i32) -> (i32, i32, i32, i32) {
    %c0_i32 = arith.constant 0 : i32
    %c0_i32_0 = arith.constant 0 : i32
    %c0_i32_1 = arith.constant 0 : i32
    return %arg0, %arg1, %c0_i32, %c0_i32_0 : i32, i32, i32, i32
  }
  func.func @transform_1(%arg0: i32, %arg1: i32) -> (i32, i32, i32, i32) {
    %c0_i32 = arith.constant 0 : i32
    %c0_i32_0 = arith.constant 0 : i32
    %c0_i32_1 = arith.constant 0 : i32
    return %arg0, %arg1, %c0_i32, %c0_i32_0 : i32, i32, i32, i32
  }
  func.func @transform_2(%arg0: i32, %arg1: i32) -> (i32, i32) {
    %c0_i32 = arith.constant 0 : i32
    %c0_i32_0 = arith.constant 0 : i32
    %c0_i32_1 = arith.constant 0 : i32
    return %c0_i32, %c0_i32_0 : i32, i32
  }
  func.func @transform_3(%arg0: i32, %arg1: i32) -> (i32, i32) {
    %c0_i32 = arith.constant 0 : i32
    %c0_i32_0 = arith.constant 0 : i32
    %c0_i32_1 = arith.constant 0 : i32
    return %c0_i32, %c0_i32_0 : i32, i32
  }
  func.func @transform_4(%arg0: i32, %arg1: i32) -> (i32, i32, i32) {
    %c0_i32 = arith.constant 0 : i32
    %c0_i32_0 = arith.constant 0 : i32
    %c0_i32_1 = arith.constant 0 : i32
    %c0_i32_2 = arith.constant 0 : i32
    return %c0_i32, %c0_i32_0, %c0_i32_1 : i32, i32, i32
  }
  func.func @transform_5(%arg0: i32, %arg1: i32) -> (i32, i32, i32) {
    %c0_i32 = arith.constant 0 : i32
    %c0_i32_0 = arith.constant 0 : i32
    %c0_i32_1 = arith.constant 0 : i32
    %c0_i32_2 = arith.constant 0 : i32
    return %c0_i32, %c0_i32_0, %c0_i32_1 : i32, i32, i32
  }
  func.func @transform_6(%arg0: i32, %arg1: i32) -> (i32, i32) {
    %c0_i32 = arith.constant 0 : i32
    %c0_i32_0 = arith.constant 0 : i32
    %c0_i32_1 = arith.constant 0 : i32
    return %c0_i32, %c0_i32_0 : i32, i32
  }
  func.func @transform_7(%arg0: i32, %arg1: i32) -> (i32, i32) {
    %c0_i32 = arith.constant 0 : i32
    %c0_i32_0 = arith.constant 0 : i32
    %c0_i32_1 = arith.constant 0 : i32
    return %c0_i32, %c0_i32_0 : i32, i32
  }
  func.func @transform_8(%arg0: i32, %arg1: i32) -> (i32, i32) {
    %c0_i32 = arith.constant 0 : i32
    %c0_i32_0 = arith.constant 0 : i32
    %c0_i32_1 = arith.constant 0 : i32
    return %c0_i32, %c0_i32_0 : i32, i32
  }
  func.func @transform_9(%arg0: i32, %arg1: i32) -> (i32, i32, i32) {
    %c0_i32 = arith.constant 0 : i32
    %c0_i32_0 = arith.constant 0 : i32
    return %arg0, %arg1, %c0_i32 : i32, i32, i32
  }
}

</mosaic_0001>

<llo_original>
// kernel: conv_stem_forward.1
$region0: #{conv_stem_forward.1}
  #allocation0 [shape = 'u32[]', space=smem, size = 0x4, offset = 0x4, fixed_abs, tag = 'smem constant byte address 0x4 - core index']
  #allocation1 [shape = 'u32[144,128]{1,0:T(1,128)}', space=vmem, size = 0x12000, scoped, tag = 'internal scratch']
  #allocation2 [shape = 'f32[8,8]{1,0:T(8,128)}', space=vmem, size = 0x1000, scoped, tag = 'scratch operand']
  %s0 = inlined_call_operand.vmem [shape: bf16[2,2,8,54], index: 0, kind: input, shape index: {}]
  %s1 = inlined_call_operand.vmem [shape: bf16[2,2,12,54], index: 1, kind: input, shape index: {}]
  %s2 = inlined_call_operand.vmem [shape: bf16[54,8], index: 2, kind: input, shape index: {}]
  %s3 = inlined_call_operand.vmem [shape: f32[1,8], index: 3, kind: input, shape index: {}]
  %s4 = inlined_call_operand.vmem [shape: bf16[3,8,8], index: 4, kind: input, shape index: {}]
  %s5 = inlined_call_operand.vmem [shape: bf16[3,8,8], index: 5, kind: input, shape index: {}]
  %s6 = inlined_call_operand.vmem [shape: f32[1,8], index: 6, kind: input, shape index: {}]
  %s7 = inlined_call_operand.vmem [shape: bf16[8,32], index: 7, kind: input, shape index: {}]
  %s8 = inlined_call_operand.vmem [shape: f32[1,32], index: 8, kind: input, shape index: {}]
  %s9 = inlined_call_operand.hbm [shape: f32[2,16,32], index: 9, kind: output, shape index: {}]
  %s10 = sld [smem:[#allocation0]]
  $region69: #{conv_stem_forward.1} parent=0
    _
  %s12 = ssub.s32 1, %s10
  %s13 = scalar_select 0, %s12, %s10
  $region1: #{conv_stem_forward.1} parent=0
    #allocation3 [shape = 'u8[8192]{0}', space=vmem, size = 0x2000, scoped, tag = 'output window, operand 0']
    #allocation4 [shape = 's32[2]{0}', space=sflag, size = 0x8, scoped, tag = 'scoped memory for conv_stem_forward.1']
    %14 = vsyncpa [#allocation4], 0
    %s15 = scalar_lea.sflag [#allocation4], 1
    %16 = vsyncpa %s15, 0
    loop: start=0, step=1, limit=6
    $region2: #{conv_stem_forward.1} parent=1 // loop_pre_header
      _
    $region3: #{conv_stem_forward.1} parent=1 // loop_header
      %s18 = sphi 0, %s22
      %p19 = scmp.ge.s32.totalorder %s18, 6
      %s25 = sphi 0, %s37
      %s26 = sphi 0, %s33
      %s27 = sphi 0, %s25
      %s28 = sphi 0, %s26
      %s29 = sphi 0, %s27
      %s30 = sphi 0, %s28
      %s42 = sphi 0, %s44
      %s45 = sphi 0, %s42
      %s46 = sphi 0, %s45
      %s62 = sphi 0, %s46
      %s70 = sphi 0, %s72
      %s73 = sphi 0, %s70
      %s74 = sphi 0, %s73
      %s90 = sphi 0, %s74
      %s94 = sphi 0, %s94
      %s96 = sphi 0, %s94
      %s97 = sphi 0, %s96
      %s111 = sphi 0, %s97
      %s115 = sphi 0, %s115
      %s117 = sphi 0, %s115
      %s118 = sphi 0, %s117
      %s132 = sphi 0, %s118
      %s136 = sphi 0, %s136
      %s138 = sphi 0, %s136
      %s139 = sphi 0, %s138
      %s153 = sphi 0, %s139
      %s157 = sphi 0, %s157
      %s159 = sphi 0, %s157
      %s160 = sphi 0, %s159
      %s174 = sphi 0, %s160
      %s178 = sphi 0, %s178
      %s180 = sphi 0, %s178
      %s181 = sphi 0, %s180
      %s195 = sphi 0, %s181
      %s199 = sphi 0, %s199
      %s201 = sphi 0, %s199
      %s202 = sphi 0, %s201
      %s216 = sphi 0, %s202
      %s220 = sphi 0, %s220
      %s222 = sphi 0, %s220
      %s223 = sphi 0, %s222
      %s237 = sphi 0, %s223
      %s245 = sphi 0, %s247
      %s248 = sphi 0, %s245
      %s249 = sphi 0, %s248
      %s265 = sphi 0, %s249
    $region4: #{conv_stem_forward.1} parent=1 // loop_header_branch
      %21 = sbr.rel (%p19) target = $region8
    $region5: #{conv_stem_forward.1} parent=1 // loop_body
      %s23 = ssub.s32 %s18, 1
      %s24 = ssub.s32 %s18, 2
      %s31 = sadd.s32 1, %s26
      %p32 = scmp.ge.s32.totalorder %s31, 2
      %s33 = scalar_select %p32, 0, %s31
      %s34 = sadd.s32 1, %s25
      %s35 = scalar_select %p32, %s34, %s25
      %p36 = scmp.ge.s32.totalorder %s35, 2
      %s37 = scalar_select %p36, 0, %s35
      %s38 = ssub.s32 %s25, %s37
      %s39 = ssub.s32 %s26, %s33
      %s40 = sor.u32 %s38, %s39
      %p41 = scmp.eq.s32.totalorder %s40, 0
      %s43 = sadd.s32 %s42, 1
      %s44 = scalar_select %p41, %s42, %s43
      %p47 = pneg %p41
      %p48 = scmp.eq.s32.totalorder %s18, 3
      %p49 = por %p47, %p48
      %p50 = scmp.ne.s32.totalorder %s42, %s45
      %p51 = scmp.eq.s32.totalorder %s18, 0
      %p52 = por %p50, %p51
      %p53 = scmp.ne.s32.totalorder %s42, %s45
      %p54 = scmp.eq.s32.totalorder %s23, 3
      %p55 = por %p53, %p54
      %p56 = scmp.ne.s32.totalorder %s45, %s46
      %p57 = scmp.eq.s32.totalorder %s23, 0
      %p58 = por %p56, %p57
      %p59 = scmp.ne.s32.totalorder %s45, %s46
      %p60 = scmp.eq.s32.totalorder %s24, 3
      %p61 = por %p59, %p60
      %p63 = scmp.ne.s32.totalorder %s46, %s62
      %p64 = scmp.eq.s32.totalorder %s24, 0
      %p65 = por %p63, %p64
      %s66 = ssub.s32 %s25, %s37
      %s67 = ssub.s32 %s26, %s33
      %s68 = sor.u32 %s66, %s67
      %p69 = scmp.eq.s32.totalorder %s68, 0
      %s71 = sadd.s32 %s70, 1
      %s72 = scalar_select %p69, %s70, %s71
      %p75 = pneg %p69
      %p76 = scmp.eq.s32.totalorder %s18, 3
      %p77 = por %p75, %p76
      %p78 = scmp.ne.s32.totalorder %s70, %s73
      %p79 = scmp.eq.s32.totalorder %s18, 0
      %p80 = por %p78, %p79
      %p81 = scmp.ne.s32.totalorder %s70, %s73
      %p82 = scmp.eq.s32.totalorder %s23, 3
      %p83 = por %p81, %p82
      %p84 = scmp.ne.s32.totalorder %s73, %s74
      %p85 = scmp.eq.s32.totalorder %s23, 0
      %p86 = por %p84, %p85
      %p87 = scmp.ne.s32.totalorder %s73, %s74
      %p88 = scmp.eq.s32.totalorder %s24, 3
      %p89 = por %p87, %p88
      %p91 = scmp.ne.s32.totalorder %s74, %s90
      %p92 = scmp.eq.s32.totalorder %s24, 0
      %p93 = por %p91, %p92
      %s95 = sadd.s32 %s94, 1
      %p98 = scmp.eq.s32.totalorder %s18, 3
      %p99 = scmp.ne.s32.totalorder %s94, %s96
      %p100 = scmp.eq.s32.totalorder %s18, 0
      %p101 = por %p99, %p100
      %p102 = scmp.ne.s32.totalorder %s94, %s96
      %p103 = scmp.eq.s32.totalorder %s23, 3
      %p104 = por %p102, %p103
      %p105 = scmp.ne.s32.totalorder %s96, %s97
      %p106 = scmp.eq.s32.totalorder %s23, 0
      %p107 = por %p105, %p106
      %p108 = scmp.ne.s32.totalorder %s96, %s97
      %p109 = scmp.eq.s32.totalorder %s24, 3
      %p110 = por %p108, %p109
      %p112 = scmp.ne.s32.totalorder %s97, %s111
      %p113 = scmp.eq.s32.totalorder %s24, 0
      %p114 = por %p112, %p113
      %s116 = sadd.s32 %s115, 1
      %p119 = scmp.eq.s32.totalorder %s18, 3
      %p120 = scmp.ne.s32.totalorder %s115, %s117
      %p121 = scmp.eq.s32.totalorder %s18, 0
      %p122 = por %p120, %p121
      %p123 = scmp.ne.s32.totalorder %s115, %s117
      %p124 = scmp.eq.s32.totalorder %s23, 3
      %p125 = por %p123, %p124
      %p126 = scmp.ne.s32.totalorder %s117, %s118
      %p127 = scmp.eq.s32.totalorder %s23, 0
      %p128 = por %p126, %p127
      %p129 = scmp.ne.s32.totalorder %s117, %s118
      %p130 = scmp.eq.s32.totalorder %s24, 3
      %p131 = por %p129, %p130
      %p133 = scmp.ne.s32.totalorder %s118, %s132
      %p134 = scmp.eq.s32.totalorder %s24, 0
      %p135 = por %p133, %p134
      %s137 = sadd.s32 %s136, 1
      %p140 = scmp.eq.s32.totalorder %s18, 3
      %p141 = scmp.ne.s32.totalorder %s136, %s138
      %p142 = scmp.eq.s32.totalorder %s18, 0
      %p143 = por %p141, %p142
      %p144 = scmp.ne.s32.totalorder %s136, %s138
      %p145 = scmp.eq.s32.totalorder %s23, 3
      %p146 = por %p144, %p145
      %p147 = scmp.ne.s32.totalorder %s138, %s139
      %p148 = scmp.eq.s32.totalorder %s23, 0
      %p149 = por %p147, %p148
      %p150 = scmp.ne.s32.totalorder %s138, %s139
      %p151 = scmp.eq.s32.totalorder %s24, 3
      %p152 = por %p150, %p151
      %p154 = scmp.ne.s32.totalorder %s139, %s153
      %p155 = scmp.eq.s32.totalorder %s24, 0
      %p156 = por %p154, %p155
      %s158 = sadd.s32 %s157, 1
      %p161 = scmp.eq.s32.totalorder %s18, 3
      %p162 = scmp.ne.s32.totalorder %s157, %s159
      %p163 = scmp.eq.s32.totalorder %s18, 0
      %p164 = por %p162, %p163
      %p165 = scmp.ne.s32.totalorder %s157, %s159
      %p166 = scmp.eq.s32.totalorder %s23, 3
      %p167 = por %p165, %p166
      %p168 = scmp.ne.s32.totalorder %s159, %s160
      %p169 = scmp.eq.s32.totalorder %s23, 0
      %p170 = por %p168, %p169
      %p171 = scmp.ne.s32.totalorder %s159, %s160
      %p172 = scmp.eq.s32.totalorder %s24, 3
      %p173 = por %p171, %p172
      %p175 = scmp.ne.s32.totalorder %s160, %s174
      %p176 = scmp.eq.s32.totalorder %s24, 0
      %p177 = por %p175, %p176
      %s179 = sadd.s32 %s178, 1
      %p182 = scmp.eq.s32.totalorder %s18, 3
      %p183 = scmp.ne.s32.totalorder %s178, %s180
      %p184 = scmp.eq.s32.totalorder %s18, 0
      %p185 = por %p183, %p184
      %p186 = scmp.ne.s32.totalorder %s178, %s180
      %p187 = scmp.eq.s32.totalorder %s23, 3
      %p188 = por %p186, %p187
      %p189 = scmp.ne.s32.totalorder %s180, %s181
      %p190 = scmp.eq.s32.totalorder %s23, 0
      %p191 = por %p189, %p190
      %p192 = scmp.ne.s32.totalorder %s180, %s181
      %p193 = scmp.eq.s32.totalorder %s24, 3
      %p194 = por %p192, %p193
      %p196 = scmp.ne.s32.totalorder %s181, %s195
      %p197 = scmp.eq.s32.totalorder %s24, 0
      %p198 = por %p196, %p197
      %s200 = sadd.s32 %s199, 1
      %p203 = scmp.eq.s32.totalorder %s18, 3
      %p204 = scmp.ne.s32.totalorder %s199, %s201
      %p205 = scmp.eq.s32.totalorder %s18, 0
      %p206 = por %p204, %p205
      %p207 = scmp.ne.s32.totalorder %s199, %s201
      %p208 = scmp.eq.s32.totalorder %s23, 3
      %p209 = por %p207, %p208
      %p210 = scmp.ne.s32.totalorder %s201, %s202
      %p211 = scmp.eq.s32.totalorder %s23, 0
      %p212 = por %p210, %p211
      %p213 = scmp.ne.s32.totalorder %s201, %s202
      %p214 = scmp.eq.s32.totalorder %s24, 3
      %p215 = por %p213, %p214
      %p217 = scmp.ne.s32.totalorder %s202, %s216
      %p218 = scmp.eq.s32.totalorder %s24, 0
      %p219 = por %p217, %p218
      %s221 = sadd.s32 %s220, 1
      %p224 = scmp.eq.s32.totalorder %s18, 3
      %p225 = scmp.ne.s32.totalorder %s220, %s222
      %p226 = scmp.eq.s32.totalorder %s18, 0
      %p227 = por %p225, %p226
      %p228 = scmp.ne.s32.totalorder %s220, %s222
      %p229 = scmp.eq.s32.totalorder %s23, 3
      %p230 = por %p228, %p229
      %p231 = scmp.ne.s32.totalorder %s222, %s223
      %p232 = scmp.eq.s32.totalorder %s23, 0
      %p233 = por %p231, %p232
      %p234 = scmp.ne.s32.totalorder %s222, %s223
      %p235 = scmp.eq.s32.totalorder %s24, 3
      %p236 = por %p234, %p235
      %p238 = scmp.ne.s32.totalorder %s223, %s237
      %p239 = scmp.eq.s32.totalorder %s24, 0
      %p240 = por %p238, %p239
      %s241 = ssub.s32 %s25, %s37
      %s242 = ssub.s32 %s26, %s33
      %s243 = sor.u32 %s241, %s242
      %p244 = scmp.eq.s32.totalorder %s243, 0
      %s246 = sadd.s32 %s245, 1
      %s247 = scalar_select %p244, %s245, %s246
      %p250 = pneg %p244
      %p251 = scmp.eq.s32.totalorder %s18, 3
      %p252 = por %p250, %p251
      %p253 = scmp.ne.s32.totalorder %s245, %s248
      %p254 = scmp.eq.s32.totalorder %s18, 0
      %p255 = por %p253, %p254
      %p256 = scmp.ne.s32.totalorder %s245, %s248
      %p257 = scmp.eq.s32.totalorder %s23, 3
      %p258 = por %p256, %p257
      %p259 = scmp.ne.s32.totalorder %s248, %s249
      %p260 = scmp.eq.s32.totalorder %s23, 0
      %p261 = por %p259, %p260
      %p262 = scmp.ne.s32.totalorder %s248, %s249
      %p263 = scmp.eq.s32.totalorder %s24, 3
      %p264 = por %p262, %p263
      %p266 = scmp.ne.s32.totalorder %s249, %s265
      %p267 = scmp.eq.s32.totalorder %s24, 0
      %p268 = por %p266, %p267
      %p269 = scmp.le.s32.totalorder 1, %s18
      %p270 = scmp.lt.s32.totalorder %s18, 5
      %p271 = pnand %p269, %p270
      %p272 = pneg %p271
      // Predicated region
      $region9: #{conv_stem_forward.1} parent=5 // pred_check
        _
      $region10: #{conv_stem_forward.1} parent=5 // pred_check_branch
        %274 = sbr.rel (%p271) target = $region12
      $region11: #{conv_stem_forward.1} parent=5 // pred_region
        %s275 = ssub.s32 %s18, 1
        // Predicated region
        $region13: #{conv_stem_forward.1} parent=11 // pred_check
          %p276 = pneg %p107
        $region14: #{conv_stem_forward.1} parent=11 // pred_check_branch
          %278 = sbr.rel (%p276) target = $region16
        $region15: #{conv_stem_forward.1} parent=11 // pred_region
          _
        $region16: #{conv_stem_forward.1} parent=11 // pred_fallthru
          _
        // Predicated region
        $region17: #{conv_stem_forward.1} parent=11 // pred_check
          %p279 = pneg %p128
        $region18: #{conv_stem_forward.1} parent=11 // pred_check_branch
          %281 = sbr.rel (%p279) target = $region20
        $region19: #{conv_stem_forward.1} parent=11 // pred_region
          _
        $region20: #{conv_stem_forward.1} parent=11 // pred_fallthru
          _
        // Predicated region
        $region21: #{conv_stem_forward.1} parent=11 // pred_check
          %p282 = pneg %p149
        $region22: #{conv_stem_forward.1} parent=11 // pred_check_branch
          %284 = sbr.rel (%p282) target = $region24
        $region23: #{conv_stem_forward.1} parent=11 // pred_region
          _
        $region24: #{conv_stem_forward.1} parent=11 // pred_fallthru
          _
        // Predicated region
        $region25: #{conv_stem_forward.1} parent=11 // pred_check
          %p285 = pneg %p170
        $region26: #{conv_stem_forward.1} parent=11 // pred_check_branch
          %287 = sbr.rel (%p285) target = $region28
        $region27: #{conv_stem_forward.1} parent=11 // pred_region
          _
        $region28: #{conv_stem_forward.1} parent=11 // pred_fallthru
          _
        // Predicated region
        $region29: #{conv_stem_forward.1} parent=11 // pred_check
          %p288 = pneg %p191
        $region30: #{conv_stem_forward.1} parent=11 // pred_check_branch
          %290 = sbr.rel (%p288) target = $region32
        $region31: #{conv_stem_forward.1} parent=11 // pred_region
          _
        $region32: #{conv_stem_forward.1} parent=11 // pred_fallthru
          _
        // Predicated region
        $region33: #{conv_stem_forward.1} parent=11 // pred_check
          %p291 = pneg %p212
        $region34: #{conv_stem_forward.1} parent=11 // pred_check_branch
          %293 = sbr.rel (%p291) target = $region36
        $region35: #{conv_stem_forward.1} parent=11 // pred_region
          _
        $region36: #{conv_stem_forward.1} parent=11 // pred_fallthru
          _
        // Predicated region
        $region37: #{conv_stem_forward.1} parent=11 // pred_check
          %p294 = pneg %p233
        $region38: #{conv_stem_forward.1} parent=11 // pred_check_branch
          %296 = sbr.rel (%p294) target = $region40
        $region39: #{conv_stem_forward.1} parent=11 // pred_region
          _
        $region40: #{conv_stem_forward.1} parent=11 // pred_fallthru
          _
      $region12: #{conv_stem_forward.1} parent=5 // pred_fallthru
        _
      %p297 = scmp.lt.s32.totalorder %s18, 4
      // Predicated region
      $region41: #{conv_stem_forward.1} parent=5 // pred_check
        %p298 = pneg %p297
      $region42: #{conv_stem_forward.1} parent=5 // pred_check_branch
        %300 = sbr.rel (%p298) target = $region44
      $region43: #{conv_stem_forward.1} parent=5 // pred_region
        // Predicated region
        $region45: #{conv_stem_forward.1} parent=43 // pred_check
          %p301 = pneg %p52
        $region46: #{conv_stem_forward.1} parent=43 // pred_check_branch
          %303 = sbr.rel (%p301) target = $region48
        $region47: #{conv_stem_forward.1} parent=43 // pred_region
          %p304 = scmp.lt.s32.totalorder %s25, 1
          %s305 = scalar_select %p304, %s25, 1
          %p306 = scmp.lt.s32.totalorder %s26, 1
          %s307 = scalar_select %p306, %s26, 1
          %s308 = smul.addr %s305, 2
          %s309 = sadd.s32 %s307, %s308
          %s310 = smul.addr %s309, 4
          %s311 = scalar_lea.vmem %s0, %s310
        $region48: #{conv_stem_forward.1} parent=43 // pred_fallthru
          _
        // Predicated region
        $region49: #{conv_stem_forward.1} parent=43 // pred_check
          %p312 = pneg %p80
        $region50: #{conv_stem_forward.1} parent=43 // pred_check_branch
          %314 = sbr.rel (%p312) target = $region52
        $region51: #{conv_stem_forward.1} parent=43 // pred_region
          %p315 = scmp.lt.s32.totalorder %s25, 1
          %s316 = scalar_select %p315, %s25, 1
          %p317 = scmp.lt.s32.totalorder %s26, 1
          %s318 = scalar_select %p317, %s26, 1
          %s319 = smul.addr %s318, 2
          %s320 = smul.addr %s316, 4
          %s321 = sadd.s32 %s319, %s320
          %s322 = smul.addr %s321, 4
          %s323 = scalar_lea.vmem %s1, %s322
        $region52: #{conv_stem_forward.1} parent=43 // pred_fallthru
          _
      $region44: #{conv_stem_forward.1} parent=5 // pred_fallthru
        _
      %p324 = scmp.le.s32.totalorder 1, %s18
      %p325 = scmp.lt.s32.totalorder %s18, 5
      %p326 = pnand %p324, %p325
      %p327 = pneg %p326
      // Predicated region
      $region53: #{conv_stem_forward.1} parent=5 // pred_check
        _
      $region54: #{conv_stem_forward.1} parent=5 // pred_check_branch
        %329 = sbr.rel (%p326) target = $region56
      $region55: #{conv_stem_forward.1} parent=5 // pred_region
        %s330 = ssub.s32 %s18, 1
        %p331 = scmp.lt.s32.totalorder %s27, 1
        %s332 = scalar_select %p331, %s27, 1
        %p333 = scmp.lt.s32.totalorder %s28, 1
        %s334 = scalar_select %p333, %s28, 1
        %s335 = smul.addr %s332, 2
        %s336 = sadd.s32 %s334, %s335
        %s337 = smul.addr %s336, 4
        %s338 = scalar_lea.vmem %s0, %s337
        %p339 = pneg %p58
        %p340 = pneg %p55
        %p341 = scmp.lt.s32.totalorder %s27, 1
        %s342 = scalar_select %p341, %s27, 1
        %p343 = scmp.lt.s32.totalorder %s28, 1
        %s344 = scalar_select %p343, %s28, 1
        %s345 = smul.addr %s344, 2
        %s346 = smul.addr %s342, 4
        %s347 = sadd.s32 %s345, %s346
        %s348 = smul.addr %s347, 4
        %s349 = scalar_lea.vmem %s1, %s348
        %p350 = pneg %p86
        %p351 = pneg %p83
        %p352 = pneg %p107
        %p353 = pneg %p104
        %p354 = pneg %p128
        %p355 = pneg %p125
        %p356 = pneg %p149
        %p357 = pneg %p146
        %p358 = pneg %p170
        %p359 = pneg %p167
        %p360 = pneg %p191
        %p361 = pneg %p188
        %p362 = pneg %p212
        %p363 = pneg %p209
        %p364 = pneg %p233
        %p365 = pneg %p230
        %p366 = pneg %p261
        %p367 = pneg %p258
        %s368 = sand.u32 %s248, 1
        %s369 = scalar_lea.sflag [#allocation4], %s368
        %s370 = sand.u32 %s248, 1
        %s371 = smul.addr %s370, 8
        %s372 = scalar_lea.vmem [#allocation3], %s371
        %p373 = scmp.lt.s32.totalorder %s27, 1
        %s374 = scalar_select %p373, %s27, 1
        %p375 = scmp.lt.s32.totalorder %s28, 1
        %s376 = scalar_select %p375, %s28, 1
        %s377 = smul.addr %s374, 2
        %s378 = sadd.s32 %s376, %s377
        %s379 = smul.addr %s378, 4
        %s380 = scalar_lea.vmem %s0, %s379
        %p381 = scmp.lt.s32.totalorder %s27, 1
        %s382 = scalar_select %p381, %s27, 1
        %p383 = scmp.lt.s32.totalorder %s28, 1
        %s384 = scalar_select %p383, %s28, 1
        %s385 = smul.addr %s384, 2
        %s386 = smul.addr %s382, 4
        %s387 = sadd.s32 %s385, %s386
        %s388 = smul.addr %s387, 4
        %s389 = scalar_lea.vmem %s1, %s388
        %v391 = vld [vmem:[%s389] sm:$0xf]
        %v392 = vld [vmem:[%s2] sm:$0xf]
        %v393 = vld [vmem:[%s2 + $0x4] sm:$0xf]
        %v394 = vld [vmem:[%s2 + $0x8] sm:$0xf]
        %v395 = vld [vmem:[%s2 + $0xc] sm:$0xf]
        %v396 = vld [vmem:[%s2 + $0x10] sm:$0xf]
        %v397 = vld [vmem:[%s2 + $0x14] sm:$0xf]
        %v398 = vld [vmem:[%s2 + $0x18] sm:$0x7]
        %v399 = vld [vmem:[%s3] sm:$0x1]
        %v401 = vlaneseq
        %v402 = vshrl.u32 %v401, 7
        %v403 = vsub.s32 0, %v402
        %v404 = vrot.slane %v399, %v403
        %v413 = vunpack.c.l.b16 %v392
        %v414 = vunpack.c.l.b16 %v393
        %v415 = vunpack.c.l.b16 %v394
        %v416 = vunpack.c.l.b16 %v395
        %v417 = vunpack.c.l.b16 %v396
        %v418 = vunpack.c.l.b16 %v397
        %v419 = vunpack.c.l.b16 %v398
        %v420 = vpack.c.b16 %v414, %v413
        %v421 = vpack.c.b16 %v416, %v415
        %v422 = vpack.c.b16 %v418, %v417
        %v423 = vpack.c.b16 %v419, %v419
        %vm427 = vcmask 441344
        %v429 = vsel %vm427, %v391, 0
        %vm431 = vcmask 1042432
        %v433 = vsel %vm431, %v423, 0
        %435 = vmatprep.subr.bf16.mxu0 0
        %436 = vmatpush1.bf16.msra.mxu0 0
        %437 = vmatprep.subr.bf16.mxu0 0
        %438 = vmatpush1.bf16.msra.mxu0 0
        %439 = vmatprep.subr.bf16.mxu0 0
        %440 = vmatpush1.bf16.msra.mxu0 0
        %441 = vmatprep.subr.bf16.mxu0 0
        %442 = vmatpush1.bf16.msra.mxu0 0
        %443 = vmatprep.subr.bf16.mxu0 0
        %444 = vmatpush1.bf16.msra.mxu0 %v433
        %445 = vmatprep.subr.bf16.mxu0 0
        %446 = vmatpush1.bf16.msra.mxu0 %v422
        %447 = vmatprep.subr.bf16.mxu0 0
        %448 = vmatpush1.bf16.msra.mxu0 %v421
        %449 = vmatprep.subr.bf16.mxu0 0
        %450 = vmatpush1.bf16.msra.mxu0 %v420
        %451 = vmatprep.subr.bf16.mxu0 0
        %452 = vmatpush2.bf16.msra.mxu0 0
        %453 = vmatprep.subr.bf16.mxu0 0
        %454 = vmatpush2.bf16.msra.mxu0 0
        %455 = vmatprep.subr.bf16.mxu0 0
        %456 = vmatpush2.bf16.msra.mxu0 0
        %457 = vmatprep.subr.bf16.mxu0 0
        %458 = vmatpush2.bf16.msra.mxu0 0
        %459 = vmatprep.subr.bf16.mxu0 0
        %460 = vmatpush2.bf16.msra.mxu0 0
        %461 = vmatprep.subr.bf16.mxu0 0
        %462 = vmatpush2.bf16.msra.mxu0 0
        %463 = vmatprep.subr.bf16.mxu0 0
        %464 = vmatpush2.bf16.msra.mxu0 0
        %465 = vmatprep.subr.bf16.mxu0 0
        %466 = vmatpush2.bf16.msra.mxu0 0
        %467 = vmatprep.mubr.bf16.mxu0 0
        %468 = vmatmul.mubr.bf16.gmra.mxu0 %v429
        %v469 = vpop.f32.mrf.mxu0
        %v470 = vadd.f32 %v404, %v469
        %v471 = vpop.f32.mrf.mxu0
        %v472 = vpop.f32.mrf.mxu0
        %v473 = vpop.f32.mrf.mxu0
        %474 = vdwg.mxu0
        %v475 = vmax.f32 %v470, 0.0
        %v476 = vpack.c.bf16 %v475, %v475
        %v477 = vld [vmem:[%s380] sm:$0xf]
        %v479 = vsel %vm427, %v477, 0
        %481 = vmatprep.subr.bf16.mxu0 0
        %482 = vmatpush1.bf16.msra.mxu0 0
        %483 = vmatprep.subr.bf16.mxu0 0
        %484 = vmatpush1.bf16.msra.mxu0 0
        %485 = vmatprep.subr.bf16.mxu0 0
        %486 = vmatpush1.bf16.msra.mxu0 0
        %487 = vmatprep.subr.bf16.mxu0 0
        %488 = vmatpush1.bf16.msra.mxu0 0
        %489 = vmatprep.subr.bf16.mxu0 0
        %490 = vmatpush1.bf16.msra.mxu0 %v433
        %491 = vmatprep.subr.bf16.mxu0 0
        %492 = vmatpush1.bf16.msra.mxu0 %v422
        %493 = vmatprep.subr.bf16.mxu0 0
        %494 = vmatpush1.bf16.msra.mxu0 %v421
        %495 = vmatprep.subr.bf16.mxu0 0
        %496 = vmatpush1.bf16.msra.mxu0 %v420
        %497 = vmatprep.subr.bf16.mxu0 0
        %498 = vmatpush2.bf16.msra.mxu0 0
        %499 = vmatprep.subr.bf16.mxu0 0
        %500 = vmatpush2.bf16.msra.mxu0 0
        %501 = vmatprep.subr.bf16.mxu0 0
        %502 = vmatpush2.bf16.msra.mxu0 0
        %503 = vmatprep.subr.bf16.mxu0 0
        %504 = vmatpush2.bf16.msra.mxu0 0
        %505 = vmatprep.subr.bf16.mxu0 0
        %506 = vmatpush2.bf16.msra.mxu0 0
        %507 = vmatprep.subr.bf16.mxu0 0
        %508 = vmatpush2.bf16.msra.mxu0 0
        %509 = vmatprep.subr.bf16.mxu0 0
        %510 = vmatpush2.bf16.msra.mxu0 0
        %511 = vmatprep.subr.bf16.mxu0 0
        %512 = vmatpush2.bf16.msra.mxu0 0
        %513 = vmatprep.mubr.bf16.mxu0 0
        %514 = vmatmul.mubr.bf16.gmra.mxu0 %v479
        %v515 = vpop.f32.mrf.mxu0
        %v516 = vadd.f32 %v404, %v515
        %v517 = vpop.f32.mrf.mxu0
        %v518 = vpop.f32.mrf.mxu0
        %v519 = vpop.f32.mrf.mxu0
        %520 = vdwg.mxu0
        %v521 = vmax.f32 %v516, 0.0
        %v522 = vpack.c.bf16 %v521, %v521
        %v523 = vld [vmem:[%s389] sm:$0xc]
        %v524 = vld [vmem:[%s389 + $0x4] sm:$0x3]
        %v527 = vunpack.c.l.b16 %v523
        %v528 = vunpack.c.l.b16 %v524
        %v529 = vpack.c.b16 %v528, %v527
        %v530 = vrot.slane %v529, 2
        %v532 = vsel %vm427, %v530, 0
        %534 = vmatprep.subr.bf16.mxu0 0
        %535 = vmatpush1.bf16.msra.mxu0 0
        %536 = vmatprep.subr.bf16.mxu0 0
        %537 = vmatpush1.bf16.msra.mxu0 0
        %538 = vmatprep.subr.bf16.mxu0 0
        %539 = vmatpush1.bf16.msra.mxu0 0
        %540 = vmatprep.subr.bf16.mxu0 0
        %541 = vmatpush1.bf16.msra.mxu0 0
        %542 = vmatprep.subr.bf16.mxu0 0
        %543 = vmatpush1.bf16.msra.mxu0 %v433
        %544 = vmatprep.subr.bf16.mxu0 0
        %545 = vmatpush1.bf16.msra.mxu0 %v422
        %546 = vmatprep.subr.bf16.mxu0 0
        %547 = vmatpush1.bf16.msra.mxu0 %v421
        %548 = vmatprep.subr.bf16.mxu0 0
        %549 = vmatpush1.bf16.msra.mxu0 %v420
        %550 = vmatprep.subr.bf16.mxu0 0
        %551 = vmatpush2.bf16.msra.mxu0 0
        %552 = vmatprep.subr.bf16.mxu0 0
        %553 = vmatpush2.bf16.msra.mxu0 0
        %554 = vmatprep.subr.bf16.mxu0 0
        %555 = vmatpush2.bf16.msra.mxu0 0
        %556 = vmatprep.subr.bf16.mxu0 0
        %557 = vmatpush2.bf16.msra.mxu0 0
        %558 = vmatprep.subr.bf16.mxu0 0
        %559 = vmatpush2.bf16.msra.mxu0 0
        %560 = vmatprep.subr.bf16.mxu0 0
        %561 = vmatpush2.bf16.msra.mxu0 0
        %562 = vmatprep.subr.bf16.mxu0 0
        %563 = vmatpush2.bf16.msra.mxu0 0
        %564 = vmatprep.subr.bf16.mxu0 0
        %565 = vmatpush2.bf16.msra.mxu0 0
        %566 = vmatprep.mubr.bf16.mxu0 0
        %567 = vmatmul.mubr.bf16.gmra.mxu0 %v532
        %v568 = vpop.f32.mrf.mxu0
        %v569 = vadd.f32 %v404, %v568
        %v570 = vpop.f32.mrf.mxu0
        %v571 = vpop.f32.mrf.mxu0
        %v572 = vpop.f32.mrf.mxu0
        %573 = vdwg.mxu0
        %v574 = vmax.f32 %v569, 0.0
        %v575 = vpack.c.bf16 %v574, %v574
        %v576 = vlaneseq
        %v577 = vshrl.u32 %v576, 7
        %vm578 = vcmp.ge.s32.totalorder %v577, 4
        %p579 = scmp.gt.s32.totalorder %s28, 0
        %s580 = scalar_select %p579, 1, 0
        %v581 = vstv %s580
        %vm582 = vcmp.eq.s32.totalorder %v581, 1
        %vm583 = vmor %vm578, %vm582
        %vm584 = vmpackc.low %vm583, %vm583
        %v585 = vsel %vm584, %v476, 0
        %v586 = vld [vmem:[%s4] sm:$0xf]
        %s587 = scalar_lea.vmem %s4, 4
        %v588 = vld [vmem:[%s587] sm:$0xf]
        %vm589 = vcmask 64512
        %v591 = vsel %vm589, %v522, 0
        %vm593 = vcmask 1043456
        %v595 = vsel %vm593, %v588, 0
        %597 = vmatprep.subr.bf16.mxu0 0
        %598 = vmatpush1.bf16.msra.mxu0 0
        %599 = vmatprep.subr.bf16.mxu0 0
        %600 = vmatpush1.bf16.msra.mxu0 0
        %601 = vmatprep.subr.bf16.mxu0 0
        %602 = vmatpush1.bf16.msra.mxu0 0
        %603 = vmatprep.subr.bf16.mxu0 0
        %604 = vmatpush1.bf16.msra.mxu0 0
        %605 = vmatprep.subr.bf16.mxu0 0
        %606 = vmatpush1.bf16.msra.mxu0 0
        %607 = vmatprep.subr.bf16.mxu0 0
        %608 = vmatpush1.bf16.msra.mxu0 0
        %609 = vmatprep.subr.bf16.mxu0 0
        %610 = vmatpush1.bf16.msra.mxu0 0
        %611 = vmatprep.subr.bf16.mxu0 0
        %612 = vmatpush1.bf16.msra.mxu0 %v595
        %613 = vmatprep.subr.bf16.mxu0 0
        %614 = vmatpush2.bf16.msra.mxu0 0
        %615 = vmatprep.subr.bf16.mxu0 0
        %616 = vmatpush2.bf16.msra.mxu0 0
        %617 = vmatprep.subr.bf16.mxu0 0
        %618 = vmatpush2.bf16.msra.mxu0 0
        %619 = vmatprep.subr.bf16.mxu0 0
        %620 = vmatpush2.bf16.msra.mxu0 0
        %621 = vmatprep.subr.bf16.mxu0 0
        %622 = vmatpush2.bf16.msra.mxu0 0
        %623 = vmatprep.subr.bf16.mxu0 0
        %624 = vmatpush2.bf16.msra.mxu0 0
        %625 = vmatprep.subr.bf16.mxu0 0
        %626 = vmatpush2.bf16.msra.mxu0 0
        %627 = vmatprep.subr.bf16.mxu0 0
        %628 = vmatpush2.bf16.msra.mxu0 0
        %629 = vmatprep.mubr.bf16.mxu0 0
        %630 = vmatmul.mubr.bf16.gmra.mxu0 %v591
        %v631 = vpop.f32.mrf.mxu0
        %v632 = vadd.f32 0.0, %v631
        %v633 = vpop.f32.mrf.mxu0
        %v634 = vpop.f32.mrf.mxu0
        %v635 = vpop.f32.mrf.mxu0
        %636 = vdwg.mxu0
        %v638 = vsel %vm589, %v585, 0
        %v641 = vsel %vm593, %v586, 0
        %643 = vmatprep.subr.bf16.mxu0 0
        %644 = vmatpush1.bf16.msra.mxu0 0
        %645 = vmatprep.subr.bf16.mxu0 0
        %646 = vmatpush1.bf16.msra.mxu0 0
        %647 = vmatprep.subr.bf16.mxu0 0
        %648 = vmatpush1.bf16.msra.mxu0 0
        %649 = vmatprep.subr.bf16.mxu0 0
        %650 = vmatpush1.bf16.msra.mxu0 0
        %651 = vmatprep.subr.bf16.mxu0 0
        %652 = vmatpush1.bf16.msra.mxu0 0
        %653 = vmatprep.subr.bf16.mxu0 0
        %654 = vmatpush1.bf16.msra.mxu0 0
        %655 = vmatprep.subr.bf16.mxu0 0
        %656 = vmatpush1.bf16.msra.mxu0 0
        %657 = vmatprep.subr.bf16.mxu0 0
        %658 = vmatpush1.bf16.msra.mxu0 %v641
        %659 = vmatprep.subr.bf16.mxu0 0
        %660 = vmatpush2.bf16.msra.mxu0 0
        %661 = vmatprep.subr.bf16.mxu0 0
        %662 = vmatpush2.bf16.msra.mxu0 0
        %663 = vmatprep.subr.bf16.mxu0 0
        %664 = vmatpush2.bf16.msra.mxu0 0
        %665 = vmatprep.subr.bf16.mxu0 0
        %666 = vmatpush2.bf16.msra.mxu0 0
        %667 = vmatprep.subr.bf16.mxu0 0
        %668 = vmatpush2.bf16.msra.mxu0 0
        %669 = vmatprep.subr.bf16.mxu0 0
        %670 = vmatpush2.bf16.msra.mxu0 0
        %671 = vmatprep.subr.bf16.mxu0 0
        %672 = vmatpush2.bf16.msra.mxu0 0
        %673 = vmatprep.subr.bf16.mxu0 0
        %674 = vmatpush2.bf16.msra.mxu0 0
        %675 = vmatprep.mubr.bf16.mxu0 0
        %676 = vmatmul.mubr.bf16.gmra.mxu0 %v638
        %v677 = vpop.f32.mrf.mxu0
        %v678 = vadd.f32 %v632, %v677
        %v679 = vpop.f32.mrf.mxu0
        %v680 = vpop.f32.mrf.mxu0
        %v681 = vpop.f32.mrf.mxu0
        %682 = vdwg.mxu0
        %s683 = scalar_lea.vmem %s4, 8
        %v684 = vld [vmem:[%s683] sm:$0xf]
        %v686 = vsel %vm589, %v575, 0
        %v689 = vsel %vm593, %v684, 0
        %691 = vmatprep.subr.bf16.mxu0 0
        %692 = vmatpush1.bf16.msra.mxu0 0
        %693 = vmatprep.subr.bf16.mxu0 0
        %694 = vmatpush1.bf16.msra.mxu0 0
        %695 = vmatprep.subr.bf16.mxu0 0
        %696 = vmatpush1.bf16.msra.mxu0 0
        %697 = vmatprep.subr.bf16.mxu0 0
        %698 = vmatpush1.bf16.msra.mxu0 0
        %699 = vmatprep.subr.bf16.mxu0 0
        %700 = vmatpush1.bf16.msra.mxu0 0
        %701 = vmatprep.subr.bf16.mxu0 0
        %702 = vmatpush1.bf16.msra.mxu0 0
        %703 = vmatprep.subr.bf16.mxu0 0
        %704 = vmatpush1.bf16.msra.mxu0 0
        %705 = vmatprep.subr.bf16.mxu0 0
        %706 = vmatpush1.bf16.msra.mxu0 %v689
        %707 = vmatprep.subr.bf16.mxu0 0
        %708 = vmatpush2.bf16.msra.mxu0 0
        %709 = vmatprep.subr.bf16.mxu0 0
        %710 = vmatpush2.bf16.msra.mxu0 0
        %711 = vmatprep.subr.bf16.mxu0 0
        %712 = vmatpush2.bf16.msra.mxu0 0
        %713 = vmatprep.subr.bf16.mxu0 0
        %714 = vmatpush2.bf16.msra.mxu0 0
        %715 = vmatprep.subr.bf16.mxu0 0
        %716 = vmatpush2.bf16.msra.mxu0 0
        %717 = vmatprep.subr.bf16.mxu0 0
        %718 = vmatpush2.bf16.msra.mxu0 0
        %719 = vmatprep.subr.bf16.mxu0 0
        %720 = vmatpush2.bf16.msra.mxu0 0
        %721 = vmatprep.subr.bf16.mxu0 0
        %722 = vmatpush2.bf16.msra.mxu0 0
        %723 = vmatprep.mubr.bf16.mxu0 0
        %724 = vmatmul.mubr.bf16.gmra.mxu0 %v686
        %v725 = vpop.f32.mrf.mxu0
        %v726 = vadd.f32 0.0, %v725
        %v727 = vpop.f32.mrf.mxu0
        %v728 = vpop.f32.mrf.mxu0
        %v729 = vpop.f32.mrf.mxu0
        %730 = vdwg.mxu0
        %v731 = vadd.f32 %v678, %v726
        %v732 = vld [vmem:[%s5] sm:$0xf]
        %s733 = scalar_lea.vmem %s5, 4
        %v734 = vld [vmem:[%s733] sm:$0xf]
        %v736 = vsel %vm593, %v734, 0
        %738 = vmatprep.subr.bf16.mxu0 0
        %739 = vmatpush1.bf16.msra.mxu0 0
        %740 = vmatprep.subr.bf16.mxu0 0
        %741 = vmatpush1.bf16.msra.mxu0 0
        %742 = vmatprep.subr.bf16.mxu0 0
        %743 = vmatpush1.bf16.msra.mxu0 0
        %744 = vmatprep.subr.bf16.mxu0 0
        %745 = vmatpush1.bf16.msra.mxu0 0
        %746 = vmatprep.subr.bf16.mxu0 0
        %747 = vmatpush1.bf16.msra.mxu0 0
        %748 = vmatprep.subr.bf16.mxu0 0
        %749 = vmatpush1.bf16.msra.mxu0 0
        %750 = vmatprep.subr.bf16.mxu0 0
        %751 = vmatpush1.bf16.msra.mxu0 0
        %752 = vmatprep.subr.bf16.mxu0 0
        %753 = vmatpush1.bf16.msra.mxu0 %v736
        %754 = vmatprep.subr.bf16.mxu0 0
        %755 = vmatpush2.bf16.msra.mxu0 0
        %756 = vmatprep.subr.bf16.mxu0 0
        %757 = vmatpush2.bf16.msra.mxu0 0
        %758 = vmatprep.subr.bf16.mxu0 0
        %759 = vmatpush2.bf16.msra.mxu0 0
        %760 = vmatprep.subr.bf16.mxu0 0
        %761 = vmatpush2.bf16.msra.mxu0 0
        %762 = vmatprep.subr.bf16.mxu0 0
        %763 = vmatpush2.bf16.msra.mxu0 0
        %764 = vmatprep.subr.bf16.mxu0 0
        %765 = vmatpush2.bf16.msra.mxu0 0
        %766 = vmatprep.subr.bf16.mxu0 0
        %767 = vmatpush2.bf16.msra.mxu0 0
        %768 = vmatprep.subr.bf16.mxu0 0
        %769 = vmatpush2.bf16.msra.mxu0 0
        %770 = vmatprep.mubr.bf16.mxu0 0
        %771 = vmatmul.mubr.bf16.gmra.mxu0 %v591
        %v772 = vpop.f32.mrf.mxu0
        %v773 = vadd.f32 0.0, %v772
        %v774 = vpop.f32.mrf.mxu0
        %v775 = vpop.f32.mrf.mxu0
        %v776 = vpop.f32.mrf.mxu0
        %777 = vdwg.mxu0
        %v779 = vsel %vm593, %v732, 0
        %781 = vmatprep.subr.bf16.mxu0 0
        %782 = vmatpush1.bf16.msra.mxu0 0
        %783 = vmatprep.subr.bf16.mxu0 0
        %784 = vmatpush1.bf16.msra.mxu0 0
        %785 = vmatprep.subr.bf16.mxu0 0
        %786 = vmatpush1.bf16.msra.mxu0 0
        %787 = vmatprep.subr.bf16.mxu0 0
        %788 = vmatpush1.bf16.msra.mxu0 0
        %789 = vmatprep.subr.bf16.mxu0 0
        %790 = vmatpush1.bf16.msra.mxu0 0
        %791 = vmatprep.subr.bf16.mxu0 0
        %792 = vmatpush1.bf16.msra.mxu0 0
        %793 = vmatprep.subr.bf16.mxu0 0
        %794 = vmatpush1.bf16.msra.mxu0 0
        %795 = vmatprep.subr.bf16.mxu0 0
        %796 = vmatpush1.bf16.msra.mxu0 %v779
        %797 = vmatprep.subr.bf16.mxu0 0
        %798 = vmatpush2.bf16.msra.mxu0 0
        %799 = vmatprep.subr.bf16.mxu0 0
        %800 = vmatpush2.bf16.msra.mxu0 0
        %801 = vmatprep.subr.bf16.mxu0 0
        %802 = vmatpush2.bf16.msra.mxu0 0
        %803 = vmatprep.subr.bf16.mxu0 0
        %804 = vmatpush2.bf16.msra.mxu0 0
        %805 = vmatprep.subr.bf16.mxu0 0
        %806 = vmatpush2.bf16.msra.mxu0 0
        %807 = vmatprep.subr.bf16.mxu0 0
        %808 = vmatpush2.bf16.msra.mxu0 0
        %809 = vmatprep.subr.bf16.mxu0 0
        %810 = vmatpush2.bf16.msra.mxu0 0
        %811 = vmatprep.subr.bf16.mxu0 0
        %812 = vmatpush2.bf16.msra.mxu0 0
        %813 = vmatprep.mubr.bf16.mxu0 0
        %814 = vmatmul.mubr.bf16.gmra.mxu0 %v638
        %v815 = vpop.f32.mrf.mxu0
        %v816 = vadd.f32 %v773, %v815
        %v817 = vpop.f32.mrf.mxu0
        %v818 = vpop.f32.mrf.mxu0
        %v819 = vpop.f32.mrf.mxu0
        %820 = vdwg.mxu0
        %s821 = scalar_lea.vmem %s5, 8
        %v822 = vld [vmem:[%s821] sm:$0xf]
        %v824 = vsel %vm593, %v822, 0
        %826 = vmatprep.subr.bf16.mxu0 0
        %827 = vmatpush1.bf16.msra.mxu0 0
        %828 = vmatprep.subr.bf16.mxu0 0
        %829 = vmatpush1.bf16.msra.mxu0 0
        %830 = vmatprep.subr.bf16.mxu0 0
        %831 = vmatpush1.bf16.msra.mxu0 0
        %832 = vmatprep.subr.bf16.mxu0 0
        %833 = vmatpush1.bf16.msra.mxu0 0
        %834 = vmatprep.subr.bf16.mxu0 0
        %835 = vmatpush1.bf16.msra.mxu0 0
        %836 = vmatprep.subr.bf16.mxu0 0
        %837 = vmatpush1.bf16.msra.mxu0 0
        %838 = vmatprep.subr.bf16.mxu0 0
        %839 = vmatpush1.bf16.msra.mxu0 0
        %840 = vmatprep.subr.bf16.mxu0 0
        %841 = vmatpush1.bf16.msra.mxu0 %v824
        %842 = vmatprep.subr.bf16.mxu0 0
        %843 = vmatpush2.bf16.msra.mxu0 0
        %844 = vmatprep.subr.bf16.mxu0 0
        %845 = vmatpush2.bf16.msra.mxu0 0
        %846 = vmatprep.subr.bf16.mxu0 0
        %847 = vmatpush2.bf16.msra.mxu0 0
        %848 = vmatprep.subr.bf16.mxu0 0
        %849 = vmatpush2.bf16.msra.mxu0 0
        %850 = vmatprep.subr.bf16.mxu0 0
        %851 = vmatpush2.bf16.msra.mxu0 0
        %852 = vmatprep.subr.bf16.mxu0 0
        %853 = vmatpush2.bf16.msra.mxu0 0
        %854 = vmatprep.subr.bf16.mxu0 0
        %855 = vmatpush2.bf16.msra.mxu0 0
        %856 = vmatprep.subr.bf16.mxu0 0
        %857 = vmatpush2.bf16.msra.mxu0 0
        %858 = vmatprep.mubr.bf16.mxu0 0
        %859 = vmatmul.mubr.bf16.gmra.mxu0 %v686
        %v860 = vpop.f32.mrf.mxu0
        %v861 = vadd.f32 0.0, %v860
        %v862 = vpop.f32.mrf.mxu0
        %v863 = vpop.f32.mrf.mxu0
        %v864 = vpop.f32.mrf.mxu0
        %865 = vdwg.mxu0
        %v866 = vadd.f32 %v816, %v861
        %v867 = vadd.s32 %v577, 1
        %vm868 = vcmp.lt.s32.totalorder %v867, 0
        %v869 = vsub.s32 0, %v867
        %v870 = vsel %vm868, %v869, %v867
        %v871 = vshrl.u32 %v870, 2
        %v872 = vand.u32 %v870, 3
        %v873 = vsub.s32 0, %v872
        %v874 = vsel %vm868, %v873, %v872
        %vm875 = vcmp.ne.s32.totalorder %v874, 0
        %vm876 = vcmp.lt.s32.totalorder %v874, 0
        %vm877 = vmand %vm876, %vm875
        %v878 = vadd.s32 %v874, 4
        %v879 = vsel %vm877, %v878, %v874
        %vm880 = vcmp.ne.s32.totalorder %v879, 0
        %v881 = vsel %vm880, %v866, 0.0
        %882 = vst.msk [vmem:[#allocation2] sm:$0xff] %vm589, %v731
        %v883 = vld [vmem:[#allocation2 + $0x1] sm:$0x7f]
        %v884 = vadd.f32 %v883, %v881
        %vm885 = vcmask 63488
        %886 = vst.msk [vmem:[#allocation2 + $0x1] sm:$0x7f] %vm885, %v884
        %v887 = vld [vmem:[#allocation2] sm:$0xff]
        %v888 = vld [vmem:[%s6] sm:$0x1]
        %v890 = vlaneseq
        %v891 = vshrl.u32 %v890, 7
        %v892 = vsub.s32 0, %v891
        %v893 = vrot.slane %v888, %v892
        %v895 = vadd.f32 %v887, %v893
        %v896 = vmax.f32 %v895, 0.0
        %v897 = vpack.c.bf16 %v896, %v896
        %v898 = vld [vmem:[%s7] sm:$0xf]
        %v899 = vld [vmem:[%s8] sm:$0x1]
        %v901 = vlaneseq
        %v902 = vshrl.u32 %v901, 7
        %v903 = vsub.s32 0, %v902
        %v904 = vrot.slane %v899, %v903
        %v907 = vsel %vm589, %v897, 0
        %v910 = vsel %vm593, %v898, 0
        %912 = vmatprep.subr.bf16.mxu0 0
        %913 = vmatpush1.bf16.msra.mxu0 0
        %914 = vmatprep.subr.bf16.mxu0 0
        %915 = vmatpush1.bf16.msra.mxu0 0
        %916 = vmatprep.subr.bf16.mxu0 0
        %917 = vmatpush1.bf16.msra.mxu0 0
        %918 = vmatprep.subr.bf16.mxu0 0
        %919 = vmatpush1.bf16.msra.mxu0 0
        %920 = vmatprep.subr.bf16.mxu0 0
        %921 = vmatpush1.bf16.msra.mxu0 0
        %922 = vmatprep.subr.bf16.mxu0 0
        %923 = vmatpush1.bf16.msra.mxu0 0
        %924 = vmatprep.subr.bf16.mxu0 0
        %925 = vmatpush1.bf16.msra.mxu0 0
        %926 = vmatprep.subr.bf16.mxu0 0
        %927 = vmatpush1.bf16.msra.mxu0 %v910
        %928 = vmatprep.subr.bf16.mxu0 0
        %929 = vmatpush2.bf16.msra.mxu0 0
        %930 = vmatprep.subr.bf16.mxu0 0
        %931 = vmatpush2.bf16.msra.mxu0 0
        %932 = vmatprep.subr.bf16.mxu0 0
        %933 = vmatpush2.bf16.msra.mxu0 0
        %934 = vmatprep.subr.bf16.mxu0 0
        %935 = vmatpush2.bf16.msra.mxu0 0
        %936 = vmatprep.subr.bf16.mxu0 0
        %937 = vmatpush2.bf16.msra.mxu0 0
        %938 = vmatprep.subr.bf16.mxu0 0
        %939 = vmatpush2.bf16.msra.mxu0 0
        %940 = vmatprep.subr.bf16.mxu0 0
        %941 = vmatpush2.bf16.msra.mxu0 0
        %942 = vmatprep.subr.bf16.mxu0 0
        %943 = vmatpush2.bf16.msra.mxu0 0
        %944 = vmatprep.mubr.bf16.mxu0 0
        %945 = vmatmul.mubr.bf16.gmra.mxu0 %v907
        %v946 = vpop.f32.mrf.mxu0
        %v947 = vadd.f32 %v904, %v946
        %v948 = vpop.f32.mrf.mxu0
        %v949 = vpop.f32.mrf.mxu0
        %v950 = vpop.f32.mrf.mxu0
        %951 = vdwg.mxu0
        %vm952 = vcmask 261120
        %953 = vst.msk [vmem:[%s372] sm:$0xff] %vm952, %v947
        %s954 = sand.u32 %s248, 1
        %s955 = scalar_lea.sflag [#allocation4], %s954
        %s956 = sand.u32 %s248, 1
        %s957 = smul.addr %s956, 8
        %s958 = scalar_lea.vmem [#allocation3], %s957
        // Predicated region
        $region57: #{conv_stem_forward.1} parent=55 // pred_check
          %p959 = pneg %p258
        $region58: #{conv_stem_forward.1} parent=55 // pred_check_branch
          %961 = sbr.rel (%p959) target = $region60
        $region59: #{conv_stem_forward.1} parent=55 // pred_region
          %s963 = ssub.s32 128, 128
          %964 = vsyncadd %s955, %s963
          %s965 = smul.addr %s27, 2
          %s966 = sadd.s32 %s28, %s965
          %s967 = smul.addr %s966, 128
          %s968 = scalar_lea.hbm %s9, %s967
          %s970 = sshll.u32 %s958, 4
          %s971 = int_to_ptr.vmem [resolvable:$true] %s970
          %973 = dma.vmem_to_hbm [thread:$0]  %s971, 128, %s968, %s955
        $region60: #{conv_stem_forward.1} parent=55 // pred_fallthru
          _
      $region56: #{conv_stem_forward.1} parent=5 // pred_fallthru
        _
      %p974 = scmp.le.s32.totalorder 2, %s18
      // Predicated region
      $region61: #{conv_stem_forward.1} parent=5 // pred_check
        %p975 = pneg %p974
      $region62: #{conv_stem_forward.1} parent=5 // pred_check_branch
        %977 = sbr.rel (%p975) target = $region64
      $region63: #{conv_stem_forward.1} parent=5 // pred_region
        %s978 = ssub.s32 %s18, 2
        // Predicated region
        $region65: #{conv_stem_forward.1} parent=63 // pred_check
          %p979 = pneg %p264
        $region66: #{conv_stem_forward.1} parent=63 // pred_check_branch
          %981 = sbr.rel (%p979) target = $region68
        $region67: #{conv_stem_forward.1} parent=63 // pred_region
          %s982 = sand.u32 %s249, 1
          %s983 = scalar_lea.sflag [#allocation4], %s982
          %s984 = sand.u32 %s249, 1
          %s985 = smul.addr %s984, 8
          %s986 = scalar_lea.vmem [#allocation3], %s985
          %987 = dma.done %s983, 128
        $region68: #{conv_stem_forward.1} parent=63 // pred_fallthru
          _
      $region64: #{conv_stem_forward.1} parent=5 // pred_fallthru
        _
    $region6: #{conv_stem_forward.1} parent=1 // loop_footer
      %s22 = sadd.s32 1, %s18
    $region7: #{conv_stem_forward.1} parent=1 // loop_footer_branch
      %17 = sbr.rel target = $region3
    $region8: #{conv_stem_forward.1} parent=1 // loop_exit
      _
    %988 = vsyncpa [#allocation4], 1
    %s989 = scalar_lea.sflag [#allocation4], 1
    %990 = vsyncpa %s989, 1

</llo_original>
